<compile_context>
chip_gen: v7x
topology: tpu7x:2x2x1
jax: 0.10.0
libtpu: 0.0.40
codegen_flags: <defaults>
</compile_context>

<pallas_src>
import functools

import jax
import jax.numpy as jnp
from jax.experimental import pallas as pl
from jax.experimental.pallas import tpu as pltpu


def _sgcn_chunk_kernel(a_ref, x_ref, w1_ref, b1_ref, w2_ref, b2_ref, out_ref,
                       *, BB, N, H):
    # x_ref: (BB*N, F) bf16 node features, pre-flattened in the wrapper
    # (no in-kernel relayout: bf16 sublane pack is 16, so reshaping here would repack).

    # SGConv projection first (A^K (x W1) == (A^K x) W1 by linearity).
    z = jnp.dot(x_ref[...], w1_ref[...],
                preferred_element_type=jnp.float32)          # (BB*N, H) f32

    # K-step propagation folded into one batch-shared block-diagonal A^K matmul.
    y = jnp.dot(a_ref[...], z.astype(jnp.bfloat16),
                preferred_element_type=jnp.float32)          # (BB*N, H) f32

    # Bias + ReLU epilogue in f32 on the VPU.
    h = jnp.maximum(y + b1_ref[...], 0.0)                    # (BB*N, H)

    # global_add_pool: f32 sublane reduce over the node axis.
    # (f32 reshape is layout-preserving since N % 8 == 0.)
    pooled = jnp.sum(h.reshape(BB, N, H), axis=1)            # (BB, H) f32

    # Final fc (dropout = identity in eval mode); bf16 MXU, f32 acc, f32 bias.
    # W2/b2 are lane-padded to 128 so this is a full, unmasked (BB, 128) store.
    out_ref[...] = (jnp.dot(pooled.astype(jnp.bfloat16), w2_ref[...],
                            preferred_element_type=jnp.float32) + b2_ref[...])


def _choose_chunking(B, N, graphs_per_step=None):
    """Pick graphs-per-grid-step (BB) and grid length (G) for the local TPU gen."""
    try:
        kind = jax.devices()[0].device_kind.lower()
    except Exception:  # pragma: no cover - defensive
        kind = ""
    if "v7" in kind or "7x" in kind:
        n_tc, cap_rows = 2, 256        # two TensorCores, 256-wide MXU
    elif "v6" in kind:
        n_tc, cap_rows = 1, 256        # one TensorCore, 256-wide MXU
    else:                              # v5e / unknown
        n_tc, cap_rows = 1, 128        # one TensorCore, 128-wide MXU

    if graphs_per_step is not None:
        bb = min(graphs_per_step, B)
        if B % bb != 0:
            raise ValueError("graphs_per_step must divide the batch size")
    else:
        max_bb = max(1, min(B // n_tc if B >= n_tc else B, max(1, cap_rows // N)))
        bb = max(d for d in range(1, max_bb + 1) if B % d == 0)

    # Keep the (BB, 128) output block tileable: BB must be 8-aligned or whole batch.
    if bb != B and bb % 8 != 0:
        bb = B
    return bb, B // bb


def sym_sim_gcn_forward(x, a_norm, w1, b1, w2, b2, *, K, graphs_per_step=None):
    """SymSimGCNNet forward (eval mode, domain_adaptation='').

    x:      (B, N, F) node features, batch of fully-connected graphs
    a_norm: (N, N) symmetric-normalized adjacency (shared across the batch)
    w1/b1:  NewSGConv linear (F -> H);  w2/b2: final fc (H -> C)
    """
    assert K >= 1
    B, N, F = x.shape
    H = w1.shape[1]
    C = w2.shape[1]
    assert N % 8 == 0, "pad the node axis to a multiple of 8 (see TODO at top)"

    BB, G = _choose_chunking(B, N, graphs_per_step)          # 1 step on v5e/v6e, 2 on v7x
    C_PAD = -(-C // 128) * 128                               # lane-dense output width

    # --- one-time wrapper precompute (batch-shared) ---
    ak = a_norm
    for _ in range(K - 1):                                   # A^K
        ak = ak @ a_norm
    a_blk = jnp.kron(jnp.eye(BB, dtype=jnp.float32), ak).astype(jnp.bfloat16)

    x_flat = x.reshape(B * N, F).astype(jnp.bfloat16)        # flatten in HBM: free
    w1_bf = w1.astype(jnp.bfloat16)
    b1_f = b1.astype(jnp.float32).reshape(1, H)
    w2_pad = jnp.zeros((H, C_PAD), jnp.bfloat16).at[:, :C].set(w2.astype(jnp.bfloat16))
    b2_pad = jnp.zeros((1, C_PAD), jnp.float32).at[:, :C].set(
        b2.astype(jnp.float32).reshape(1, C))

    cost = pl.CostEstimate(
        flops=2 * B * N * F * H + 2 * G * (BB * N) ** 2 * H + 2 * B * H * C_PAD,
        transcendentals=0,
        bytes_accessed=(x_flat.size * 2 + a_blk.size * 2 + w1_bf.size * 2
                        + b1_f.size * 4 + w2_pad.size * 2 + b2_pad.size * 4
                        + B * C_PAD * 4),
    )

    kernel = functools.partial(_sgcn_chunk_kernel, BB=BB, N=N, H=H)

    out_pad = pl.pallas_call(
        kernel,
        out_shape=jax.ShapeDtypeStruct((B, C_PAD), jnp.float32),
        grid_spec=pltpu.PrefetchScalarGridSpec(
            num_scalar_prefetch=0,
            grid=(G,),
            in_specs=[
                pl.BlockSpec((BB * N, BB * N), lambda i: (0, 0)),   # kron(I, A^K), shared
                pl.BlockSpec((BB * N, F), lambda i: (i, 0)),        # chunk features (flat)
                pl.BlockSpec((F, H), lambda i: (0, 0)),             # SGConv lin weight
                pl.BlockSpec((1, H), lambda i: (0, 0)),             # SGConv lin bias
                pl.BlockSpec((H, C_PAD), lambda i: (0, 0)),         # fc weight (bf16, padded)
                pl.BlockSpec((1, C_PAD), lambda i: (0, 0)),         # fc bias (padded)
            ],
            out_specs=pl.BlockSpec((BB, C_PAD), lambda i: (i, 0)),  # lane-dense slab/chunk
        ),
        compiler_params=pltpu.CompilerParams(
            dimension_semantics=("parallel",)),
        cost_estimate=cost,
    )(a_blk, x_flat, w1_bf, b1_f, w2_pad, b2_pad)

    return out_pad[:, :C]


def build_norm_adj(edge_weight_tril, num_nodes):
    """Glue: reproduce SymSimGCNNet edge-weight symmetrization + NewSGConv.norm.

    Assumes a fully connected per-graph edge_index (all N*N pairs incl. self-loops),
    which is what the PyTorch forward requires (edge_weight has N*N entries per graph).
    """
    xs, ys = jnp.tril_indices(num_nodes)
    w = jnp.zeros((num_nodes, num_nodes), jnp.float32).at[xs, ys].set(edge_weight_tril)
    w = w + w.T - jnp.diag(jnp.diag(w))                      # symmetrize
    deg = jnp.sum(jnp.abs(w), axis=1)                        # scatter_add(|w|, row)
    deg_inv_sqrt = jnp.where(deg > 0, deg ** -0.5, 0.0)      # inf -> 0
    return deg_inv_sqrt[:, None] * w * deg_inv_sqrt[None, :]


if __name__ == "__main__":
    # batch, nodes, features, hidden, classes, K
    B, N, F, H, C, K = 16, 8, 16, 32, 3, 2

    key = jax.random.PRNGKey(0)
    k1, k2, k3, k4, k5, k6 = jax.random.split(key, 6)

    # Deterministic synthetic parameters (shapes from __init__).
    init_edge_weight = jax.random.normal(k1, (N, N), jnp.float32)
    xs, ys = jnp.tril_indices(N)
    edge_weight_param = init_edge_weight[xs, ys]             # learnable lower-tri weights
    w1 = jax.random.normal(k2, (F, H), jnp.float32) * 0.1    # NewSGConv lin: (F -> H)
    b1 = jax.random.normal(k3, (1, H), jnp.float32) * 0.1
    w2 = jax.random.normal(k4, (H, C), jnp.float32) * 0.1    # fc: (H -> C)
    b2 = jax.random.normal(k5, (1, C), jnp.float32) * 0.1

    # data.x for a batch of B fully-connected graphs with N nodes each.
    x = jax.random.normal(k6, (B, N, F), jnp.float32)

    a_norm = build_norm_adj(edge_weight_param, N)

    out = sym_sim_gcn_forward(x, a_norm, w1, b1, w2, b2, K=K)
    out = jax.block_until_ready(out)
    assert out.shape == (B, C), out.shape

    # Reference 1: mirrors the kernel's mixed precision (bf16 MXU, f32 acc) -> tight tol.
    def ref_kernel_math(xb):
        ak = a_norm
        for _ in range(K - 1):
            ak = ak @ a_norm
        z = jnp.einsum("bnf,fh->bnh", xb.astype(jnp.bfloat16), w1.astype(jnp.bfloat16),
                       preferred_element_type=jnp.float32)
        y = jnp.einsum("nm,bmh->bnh", ak.astype(jnp.bfloat16), z.astype(jnp.bfloat16),
                       preferred_element_type=jnp.float32)
        h = jnp.maximum(y + b1, 0.0)
        pooled = jnp.sum(h, axis=1)                          # global_add_pool
        return jnp.dot(pooled.astype(jnp.bfloat16), w2.astype(jnp.bfloat16),
                       preferred_element_type=jnp.float32) + b2

    ref_bf16 = ref_kernel_math(x)
    assert jnp.allclose(out, ref_bf16, atol=1e-2, rtol=1e-2), (out, ref_bf16)

    # Reference 2: pure-f32, PyTorch-faithful SGConv order (K-step propagate, then
    # lin + bias, relu, global_add_pool, dropout=identity, fc) -> looser tol for bf16.
    def ref_f32(xb):
        xp = xb
        for _ in range(K):
            xp = jnp.einsum("nm,bmf->bnf", a_norm, xp)
        h = jnp.maximum(jnp.einsum("bnf,fh->bnh", xp, w1) + b1, 0.0)
        pooled = jnp.sum(h, axis=1)
        return pooled @ w2 + b2

    ref32 = ref_f32(x)
    assert jnp.allclose(out, ref32, atol=3e-2, rtol=3e-2), (out, ref32)

    print("KERNEL_OK")
</pallas_src>

<mosaic_0001>
module attributes {stable_mosaic.version = 11 : i64} {
  func.func @_sgcn_chunk_kernel(%arg0: i32, %arg1: memref<128x128xbf16, #tpu.memory_space<vmem>>, %arg2: memref<128x16xbf16, #tpu.memory_space<vmem>>, %arg3: memref<16x32xbf16, #tpu.memory_space<vmem>>, %arg4: memref<1x32xf32, #tpu.memory_space<vmem>>, %arg5: memref<32x128xbf16, #tpu.memory_space<vmem>>, %arg6: memref<1x128xf32, #tpu.memory_space<vmem>>, %arg7: memref<16x128xf32, #tpu.memory_space<vmem>>) attributes {dimension_semantics = [#tpu.dimension_semantics<parallel>], iteration_bounds = array<i64: 1>, scalar_prefetch = 0 : i64, scratch_operands = 0 : i64, tpu.core_type = #tpu.core_type<tc>, window_params = [{pipeline_mode = #tpu.pipeline_mode<synchronous>, transform_indices = @transform_0, window_bounds = array<i64: 128, 128>}, {transform_indices = @transform_1, window_bounds = array<i64: 128, 16>}, {pipeline_mode = #tpu.pipeline_mode<synchronous>, transform_indices = @transform_2, window_bounds = array<i64: 16, 32>}, {pipeline_mode = #tpu.pipeline_mode<synchronous>, transform_indices = @transform_3, window_bounds = array<i64: 1, 32>}, {pipeline_mode = #tpu.pipeline_mode<synchronous>, transform_indices = @transform_4, window_bounds = array<i64: 32, 128>}, {pipeline_mode = #tpu.pipeline_mode<synchronous>, transform_indices = @transform_5, window_bounds = array<i64: 1, 128>}, {transform_indices = @transform_6, window_bounds = array<i64: 16, 128>}]} {
    %c0 = arith.constant 0 : index
    %c0_0 = arith.constant 0 : index
    %0 = vector.load %arg2[%c0, %c0_0] : memref<128x16xbf16, #tpu.memory_space<vmem>>, vector<128x16xbf16>
    %c0_1 = arith.constant 0 : index
    %c0_2 = arith.constant 0 : index
    %1 = vector.load %arg3[%c0_1, %c0_2] : memref<16x32xbf16, #tpu.memory_space<vmem>>, vector<16x32xbf16>
    %cst = arith.constant dense<0.000000e+00> : vector<128x32xf32>
    %2 = tpu.matmul %0, %1, %cst {dimension_numbers = #tpu.dot_dimension_numbers<[1], [0], [0], [1], [0, 0, 1, 1], [], []>} : vector<128x16xbf16>, vector<16x32xbf16>, vector<128x32xf32> -> vector<128x32xf32>
    %c0_3 = arith.constant 0 : index
    %c0_4 = arith.constant 0 : index
    %3 = vector.load %arg1[%c0_3, %c0_4] : memref<128x128xbf16, #tpu.memory_space<vmem>>, vector<128x128xbf16>
    %4 = arith.truncf %2 : vector<128x32xf32> to vector<128x32xbf16>
    %cst_5 = arith.constant dense<0.000000e+00> : vector<128x32xf32>
    %5 = tpu.matmul %3, %4, %cst_5 {dimension_numbers = #tpu.dot_dimension_numbers<[1], [0], [0], [1], [0, 0, 1, 1], [], []>} : vector<128x128xbf16>, vector<128x32xbf16>, vector<128x32xf32> -> vector<128x32xf32>
    %c0_6 = arith.constant 0 : index
    %c0_7 = arith.constant 0 : index
    %6 = vector.load %arg4[%c0_6, %c0_7] : memref<1x32xf32, #tpu.memory_space<vmem>>, vector<1x32xf32>
    %7 = vector.broadcast %6 : vector<1x32xf32> to vector<128x32xf32>
    %8 = arith.addf %5, %7 : vector<128x32xf32>
    %cst_8 = arith.constant 0.000000e+00 : f32
    %9 = vector.broadcast %cst_8 : f32 to vector<128x32xf32>
    %10 = arith.maximumf %8, %9 : vector<128x32xf32>
    %11 = vector.shape_cast %10 : vector<128x32xf32> to vector<16x8x32xf32>
    %cst_9 = arith.constant dense<0.000000e+00> : vector<16x32xf32>
    %12 = vector.multi_reduction <add>, %11, %cst_9 [1] : vector<16x8x32xf32> to vector<16x32xf32>
    %13 = arith.truncf %12 : vector<16x32xf32> to vector<16x32xbf16>
    %c0_10 = arith.constant 0 : index
    %c0_11 = arith.constant 0 : index
    %14 = vector.load %arg5[%c0_10, %c0_11] : memref<32x128xbf16, #tpu.memory_space<vmem>>, vector<32x128xbf16>
    %cst_12 = arith.constant dense<0.000000e+00> : vector<16x128xf32>
    %15 = tpu.matmul %13, %14, %cst_12 {dimension_numbers = #tpu.dot_dimension_numbers<[1], [0], [0], [1], [0, 0, 1, 1], [], []>} : vector<16x32xbf16>, vector<32x128xbf16>, vector<16x128xf32> -> vector<16x128xf32>
    %c0_13 = arith.constant 0 : index
    %c0_14 = arith.constant 0 : index
    %16 = vector.load %arg6[%c0_13, %c0_14] : memref<1x128xf32, #tpu.memory_space<vmem>>, vector<1x128xf32>
    %17 = vector.broadcast %16 : vector<1x128xf32> to vector<16x128xf32>
    %18 = arith.addf %15, %17 : vector<16x128xf32>
    %c0_15 = arith.constant 0 : index
    %c0_16 = arith.constant 0 : index
    %19 = vector.load %arg7[%c0_15, %c0_16] : memref<16x128xf32, #tpu.memory_space<vmem>>, vector<16x128xf32>
    tpu.vector_store %arg7[%c0_15, %c0_16], %18 {strides = array<i32>} : memref<16x128xf32, #tpu.memory_space<vmem>>, vector<16x128xf32>,
    return
  }
  func.func @transform_0(%arg0: i32) -> (i32, i32) {
    %c0_i32 = arith.constant 0 : i32
    %c0_i32_0 = arith.constant 0 : i32
    %c0_i32_1 = arith.constant 0 : i32
    return %c0_i32, %c0_i32_0 : i32, i32
  }
  func.func @transform_1(%arg0: i32) -> (i32, i32) {
    %c0_i32 = arith.constant 0 : i32
    %c0_i32_0 = arith.constant 0 : i32
    return %arg0, %c0_i32 : i32, i32
  }
  func.func @transform_2(%arg0: i32) -> (i32, i32) {
    %c0_i32 = arith.constant 0 : i32
    %c0_i32_0 = arith.constant 0 : i32
    %c0_i32_1 = arith.constant 0 : i32
    return %c0_i32, %c0_i32_0 : i32, i32
  }
  func.func @transform_3(%arg0: i32) -> (i32, i32) {
    %c0_i32 = arith.constant 0 : i32
    %c0_i32_0 = arith.constant 0 : i32
    %c0_i32_1 = arith.constant 0 : i32
    return %c0_i32, %c0_i32_0 : i32, i32
  }
  func.func @transform_4(%arg0: i32) -> (i32, i32) {
    %c0_i32 = arith.constant 0 : i32
    %c0_i32_0 = arith.constant 0 : i32
    %c0_i32_1 = arith.constant 0 : i32
    return %c0_i32, %c0_i32_0 : i32, i32
  }
  func.func @transform_5(%arg0: i32) -> (i32, i32) {
    %c0_i32 = arith.constant 0 : i32
    %c0_i32_0 = arith.constant 0 : i32
    %c0_i32_1 = arith.constant 0 : i32
    return %c0_i32, %c0_i32_0 : i32, i32
  }
  func.func @transform_6(%arg0: i32) -> (i32, i32) {
    %c0_i32 = arith.constant 0 : i32
    %c0_i32_0 = arith.constant 0 : i32
    return %arg0, %c0_i32 : i32, i32
  }
}

</mosaic_0001>

<llo_original>
// kernel: tpu_custom_call.1
$region0: #{tpu_custom_call.1}
  #allocation0 [shape = 'u32[]', space=smem, size = 0x4, offset = 0x4, fixed_abs, tag = 'smem constant byte address 0x4 - core index']
  #allocation1 [shape = 'u32[144,128]{1,0:T(1,128)}', space=vmem, size = 0x12000, scoped, tag = 'internal scratch']
  %s0 = inlined_call_operand.vmem [shape: bf16[128,128], index: 0, kind: input, shape index: {}]
  %s1 = inlined_call_operand.vmem [shape: bf16[128,16], index: 1, kind: input, shape index: {}]
  %s2 = inlined_call_operand.hbm [shape: bf16[16,32], index: 2, kind: input, shape index: {}]
  %s3 = inlined_call_operand.vmem [shape: f32[1,32], index: 3, kind: input, shape index: {}]
  %s4 = inlined_call_operand.vmem [shape: bf16[32,128], index: 4, kind: input, shape index: {}]
  %s5 = inlined_call_operand.vmem [shape: f32[1,128], index: 5, kind: input, shape index: {}]
  %s6 = inlined_call_operand.hbm [shape: f32[16,128], index: 6, kind: output, shape index: {}]
  %s7 = sld [smem:[#allocation0]]
  $region38: #{tpu_custom_call.1} parent=0
    _
  %s9 = ssub.s32 1, %s7
  %s10 = scalar_select 0, %s9, %s7
  $region1: #{tpu_custom_call.1} parent=0
    #allocation2 [shape = 'u8[4096]{0}', space=vmem, size = 0x1000, scoped, tag = 'input window, operand 2, single buffered']
    #allocation3 [shape = 's32[1]{0}', space=sflag, size = 0x4, scoped, tag = 'scoped memory for tpu_custom_call.1']
    #allocation4 [shape = 's32[1]{0}', space=sflag, size = 0x4, scoped, tag = 'scoped memory for tpu_custom_call.1']
    #allocation5 [shape = 'u8[8192]{0}', space=vmem, size = 0x2000, scoped, tag = 'output window, operand 0, single buffered']
    %11 = vsyncpa [#allocation3], 0
    %12 = vsyncpa [#allocation4], 0
    // Predicated region
    $region2: #{tpu_custom_call.1} parent=1 // pred_check
      _
    $region3: #{tpu_custom_call.1} parent=1 // pred_check_branch
      %14 = sbr.rel (0) target = $region5
    $region4: #{tpu_custom_call.1} parent=1 // pred_region
      _
    $region5: #{tpu_custom_call.1} parent=1 // pred_fallthru
      _
    // Predicated region
    $region6: #{tpu_custom_call.1} parent=1 // pred_check
      _
    $region7: #{tpu_custom_call.1} parent=1 // pred_check_branch
      %16 = sbr.rel (0) target = $region9
    $region8: #{tpu_custom_call.1} parent=1 // pred_region
      _
    $region9: #{tpu_custom_call.1} parent=1 // pred_fallthru
      _
    // Predicated region
    $region10: #{tpu_custom_call.1} parent=1 // pred_check
      _
    $region11: #{tpu_custom_call.1} parent=1 // pred_check_branch
      %18 = sbr.rel (0) target = $region13
    $region12: #{tpu_custom_call.1} parent=1 // pred_region
      %s20 = ssub.s32 128, 128
      %21 = vsyncadd [#allocation3], %s20
      %s22 = sshll.u32 [#allocation2], 4
      %s23 = int_to_ptr.vmem [resolvable:$true] %s22
      %28 = dma.hbm_to_vmem [thread:$0]  %s2, 128, %s23, [#allocation3], 64, 64, 4
    $region13: #{tpu_custom_call.1} parent=1 // pred_fallthru
      _
    // Predicated region
    $region14: #{tpu_custom_call.1} parent=1 // pred_check
      _
    $region15: #{tpu_custom_call.1} parent=1 // pred_check_branch
      %30 = sbr.rel (0) target = $region17
    $region16: #{tpu_custom_call.1} parent=1 // pred_region
      _
    $region17: #{tpu_custom_call.1} parent=1 // pred_fallthru
      _
    // Predicated region
    $region18: #{tpu_custom_call.1} parent=1 // pred_check
      _
    $region19: #{tpu_custom_call.1} parent=1 // pred_check_branch
      %32 = sbr.rel (0) target = $region21
    $region20: #{tpu_custom_call.1} parent=1 // pred_region
      _
    $region21: #{tpu_custom_call.1} parent=1 // pred_fallthru
      _
    // Predicated region
    $region22: #{tpu_custom_call.1} parent=1 // pred_check
      _
    $region23: #{tpu_custom_call.1} parent=1 // pred_check_branch
      %34 = sbr.rel (0) target = $region25
    $region24: #{tpu_custom_call.1} parent=1 // pred_region
      _
    $region25: #{tpu_custom_call.1} parent=1 // pred_fallthru
      _
    // Predicated region
    $region26: #{tpu_custom_call.1} parent=1 // pred_check
      _
    $region27: #{tpu_custom_call.1} parent=1 // pred_check_branch
      %36 = sbr.rel (0) target = $region29
    $region28: #{tpu_custom_call.1} parent=1 // pred_region
      %37 = dma.done [#allocation3], 128
    $region29: #{tpu_custom_call.1} parent=1 // pred_fallthru
      _
    %v39 = vld [vmem:[%s1] sm:$0xf]
    %v40 = vld [vmem:[%s1 + $0x4] sm:$0xf]
    %v41 = vld [vmem:[%s1 + $0x8] sm:$0xf]
    %v42 = vld [vmem:[%s1 + $0xc] sm:$0xf]
    %v43 = vld [vmem:[%s1 + $0x10] sm:$0xf]
    %v44 = vld [vmem:[%s1 + $0x14] sm:$0xf]
    %v45 = vld [vmem:[%s1 + $0x18] sm:$0xf]
    %v46 = vld [vmem:[%s1 + $0x1c] sm:$0xf]
    %v47 = vld [vmem:[%s1 + $0x20] sm:$0xf]
    %v48 = vld [vmem:[%s1 + $0x24] sm:$0xf]
    %v49 = vld [vmem:[%s1 + $0x28] sm:$0xf]
    %v50 = vld [vmem:[%s1 + $0x2c] sm:$0xf]
    %v51 = vld [vmem:[%s1 + $0x30] sm:$0xf]
    %v52 = vld [vmem:[%s1 + $0x34] sm:$0xf]
    %v53 = vld [vmem:[%s1 + $0x38] sm:$0xf]
    %v54 = vld [vmem:[%s1 + $0x3c] sm:$0xf]
    %v55 = vld [vmem:[#allocation2] sm:$0xf]
    %v56 = vld [vmem:[#allocation2 + $0x4] sm:$0xf]
    %v73 = vunpack.c.l.b16 %v39
    %v74 = vunpack.c.l.b16 %v40
    %v75 = vunpack.c.l.b16 %v41
    %v76 = vunpack.c.l.b16 %v42
    %v77 = vunpack.c.l.b16 %v43
    %v78 = vunpack.c.l.b16 %v44
    %v79 = vunpack.c.l.b16 %v45
    %v80 = vunpack.c.l.b16 %v46
    %v81 = vunpack.c.l.b16 %v47
    %v82 = vunpack.c.l.b16 %v48
    %v83 = vunpack.c.l.b16 %v49
    %v84 = vunpack.c.l.b16 %v50
    %v85 = vunpack.c.l.b16 %v51
    %v86 = vunpack.c.l.b16 %v52
    %v87 = vunpack.c.l.b16 %v53
    %v88 = vunpack.c.l.b16 %v54
    %v89 = vpack.c.b16 %v74, %v73
    %v90 = vpack.c.b16 %v76, %v75
    %v91 = vpack.c.b16 %v78, %v77
    %v92 = vpack.c.b16 %v80, %v79
    %v93 = vpack.c.b16 %v82, %v81
    %v94 = vpack.c.b16 %v84, %v83
    %v95 = vpack.c.b16 %v86, %v85
    %v96 = vpack.c.b16 %v88, %v87
    %v99 = vunpack.c.l.b16 %v55
    %v100 = vunpack.c.l.b16 %v56
    %v101 = vpack.c.b16 %v100, %v99
    %vm103 = vcmask 130048
    %v105 = vsel %vm103, %v89, 0
    %v108 = vsel %vm103, %v90, 0
    %v111 = vsel %vm103, %v91, 0
    %v114 = vsel %vm103, %v92, 0
    %v117 = vsel %vm103, %v93, 0
    %v120 = vsel %vm103, %v94, 0
    %v123 = vsel %vm103, %v95, 0
    %v126 = vsel %vm103, %v96, 0
    %128 = vmatprep.subr.bf16.mxu0 0
    %129 = vmatpush1.bf16.msra.mxu0 %v101
    %130 = vmatprep.subr.bf16.mxu0 0
    %131 = vmatpush1.bf16.msra.mxu0 0
    %132 = vmatprep.subr.bf16.mxu0 0
    %133 = vmatpush1.bf16.msra.mxu0 0
    %134 = vmatprep.subr.bf16.mxu0 0
    %135 = vmatpush1.bf16.msra.mxu0 0
    %136 = vmatprep.subr.bf16.mxu0 0
    %137 = vmatpush1.bf16.msra.mxu0 0
    %138 = vmatprep.subr.bf16.mxu0 0
    %139 = vmatpush1.bf16.msra.mxu0 0
    %140 = vmatprep.subr.bf16.mxu0 0
    %141 = vmatpush1.bf16.msra.mxu0 0
    %142 = vmatprep.subr.bf16.mxu0 0
    %143 = vmatpush1.bf16.msra.mxu0 0
    %144 = vmatprep.subr.bf16.mxu0 0
    %145 = vmatpush1.bf16.msra.mxu0 0
    %146 = vmatprep.subr.bf16.mxu0 0
    %147 = vmatpush1.bf16.msra.mxu0 0
    %148 = vmatprep.subr.bf16.mxu0 0
    %149 = vmatpush1.bf16.msra.mxu0 0
    %150 = vmatprep.subr.bf16.mxu0 0
    %151 = vmatpush1.bf16.msra.mxu0 0
    %152 = vmatprep.subr.bf16.mxu0 0
    %153 = vmatpush1.bf16.msra.mxu0 0
    %154 = vmatprep.subr.bf16.mxu0 0
    %155 = vmatpush1.bf16.msra.mxu0 0
    %156 = vmatprep.subr.bf16.mxu0 0
    %157 = vmatpush1.bf16.msra.mxu0 0
    %158 = vmatprep.subr.bf16.mxu0 0
    %159 = vmatpush1.bf16.msra.mxu0 0
    %160 = vmatprep.mubr.bf16.mxu0 0
    %161 = vmatmul.mubr.bf16.gmra.mrb[0].mxu0 %v105
    %v162 = vpop.f32.mrb[0].mxu0
    %v163 = vadd.f32 0.0, %v162
    %v164 = vpop.f32.mrb[0].mxu0
    %v165 = vpop.f32.mrb[0].mxu0
    %v166 = vadd.f32 0.0, %v165
    %v167 = vpop.f32.mrb[0].mxu0
    %168 = vmatprep.mubr.bf16.mxu0 0
    %169 = vmatmul.mubr.bf16.gmra.mrb[0].mxu0 %v108
    %v170 = vpop.f32.mrb[0].mxu0
    %v171 = vadd.f32 0.0, %v170
    %v172 = vpop.f32.mrb[0].mxu0
    %v173 = vpop.f32.mrb[0].mxu0
    %v174 = vadd.f32 0.0, %v173
    %v175 = vpop.f32.mrb[0].mxu0
    %176 = vmatprep.mubr.bf16.mxu0 0
    %177 = vmatmul.mubr.bf16.gmra.mrb[0].mxu0 %v111
    %v178 = vpop.f32.mrb[0].mxu0
    %v179 = vadd.f32 0.0, %v178
    %v180 = vpop.f32.mrb[0].mxu0
    %v181 = vpop.f32.mrb[0].mxu0
    %v182 = vadd.f32 0.0, %v181
    %v183 = vpop.f32.mrb[0].mxu0
    %184 = vmatprep.mubr.bf16.mxu0 0
    %185 = vmatmul.mubr.bf16.gmra.mrb[0].mxu0 %v114
    %v186 = vpop.f32.mrb[0].mxu0
    %v187 = vadd.f32 0.0, %v186
    %v188 = vpop.f32.mrb[0].mxu0
    %v189 = vpop.f32.mrb[0].mxu0
    %v190 = vadd.f32 0.0, %v189
    %v191 = vpop.f32.mrb[0].mxu0
    %192 = vmatprep.mubr.bf16.mxu0 0
    %193 = vmatmul.mubr.bf16.gmra.mrb[0].mxu0 %v117
    %v194 = vpop.f32.mrb[0].mxu0
    %v195 = vadd.f32 0.0, %v194
    %v196 = vpop.f32.mrb[0].mxu0
    %v197 = vpop.f32.mrb[0].mxu0
    %v198 = vadd.f32 0.0, %v197
    %v199 = vpop.f32.mrb[0].mxu0
    %200 = vmatprep.mubr.bf16.mxu0 0
    %201 = vmatmul.mubr.bf16.gmra.mrb[0].mxu0 %v120
    %v202 = vpop.f32.mrb[0].mxu0
    %v203 = vadd.f32 0.0, %v202
    %v204 = vpop.f32.mrb[0].mxu0
    %v205 = vpop.f32.mrb[0].mxu0
    %v206 = vadd.f32 0.0, %v205
    %v207 = vpop.f32.mrb[0].mxu0
    %208 = vmatprep.mubr.bf16.mxu0 0
    %209 = vmatmul.mubr.bf16.gmra.mrb[0].mxu0 %v123
    %v210 = vpop.f32.mrb[0].mxu0
    %v211 = vadd.f32 0.0, %v210
    %v212 = vpop.f32.mrb[0].mxu0
    %v213 = vpop.f32.mrb[0].mxu0
    %v214 = vadd.f32 0.0, %v213
    %v215 = vpop.f32.mrb[0].mxu0
    %216 = vmatprep.mubr.bf16.mxu0 0
    %217 = vmatmul.mubr.bf16.gmra.mrb[0].mxu0 %v126
    %v218 = vpop.f32.mrb[0].mxu0
    %v219 = vadd.f32 0.0, %v218
    %v220 = vpop.f32.mrb[0].mxu0
    %v221 = vpop.f32.mrb[0].mxu0
    %v222 = vadd.f32 0.0, %v221
    %v223 = vpop.f32.mrb[0].mxu0
    %224 = vdwg.mxu0
    %v225 = vld [vmem:[%s0] sm:$0xf]
    %v226 = vld [vmem:[%s0 + $0x4] sm:$0xf]
    %v227 = vld [vmem:[%s0 + $0x8] sm:$0xf]
    %v228 = vld [vmem:[%s0 + $0xc] sm:$0xf]
    %v229 = vld [vmem:[%s0 + $0x10] sm:$0xf]
    %v230 = vld [vmem:[%s0 + $0x14] sm:$0xf]
    %v231 = vld [vmem:[%s0 + $0x18] sm:$0xf]
    %v232 = vld [vmem:[%s0 + $0x1c] sm:$0xf]
    %v233 = vld [vmem:[%s0 + $0x20] sm:$0xf]
    %v234 = vld [vmem:[%s0 + $0x24] sm:$0xf]
    %v235 = vld [vmem:[%s0 + $0x28] sm:$0xf]
    %v236 = vld [vmem:[%s0 + $0x2c] sm:$0xf]
    %v237 = vld [vmem:[%s0 + $0x30] sm:$0xf]
    %v238 = vld [vmem:[%s0 + $0x34] sm:$0xf]
    %v239 = vld [vmem:[%s0 + $0x38] sm:$0xf]
    %v240 = vld [vmem:[%s0 + $0x3c] sm:$0xf]
    %v241 = vpack.c.bf16 %v166, %v163
    %v242 = vpack.c.bf16 %v174, %v171
    %v243 = vpack.c.bf16 %v182, %v179
    %v244 = vpack.c.bf16 %v190, %v187
    %v245 = vpack.c.bf16 %v198, %v195
    %v246 = vpack.c.bf16 %v206, %v203
    %v247 = vpack.c.bf16 %v214, %v211
    %v248 = vpack.c.bf16 %v222, %v219
    %v249 = vld [vmem:[%s3] sm:$0x1]
    %v251 = vlaneseq
    %v252 = vshrl.u32 %v251, 7
    %v253 = vsub.s32 0, %v252
    %v254 = vrot.slane %v249, %v253
    %v272 = vunpack.c.l.b16 %v225
    %v273 = vunpack.c.l.b16 %v226
    %v274 = vunpack.c.l.b16 %v227
    %v275 = vunpack.c.l.b16 %v228
    %v276 = vunpack.c.l.b16 %v229
    %v277 = vunpack.c.l.b16 %v230
    %v278 = vunpack.c.l.b16 %v231
    %v279 = vunpack.c.l.b16 %v232
    %v280 = vunpack.c.l.b16 %v233
    %v281 = vunpack.c.l.b16 %v234
    %v282 = vunpack.c.l.b16 %v235
    %v283 = vunpack.c.l.b16 %v236
    %v284 = vunpack.c.l.b16 %v237
    %v285 = vunpack.c.l.b16 %v238
    %v286 = vunpack.c.l.b16 %v239
    %v287 = vunpack.c.l.b16 %v240
    %v288 = vpack.c.b16 %v273, %v272
    %v289 = vpack.c.b16 %v275, %v274
    %v290 = vpack.c.b16 %v277, %v276
    %v291 = vpack.c.b16 %v279, %v278
    %v292 = vpack.c.b16 %v281, %v280
    %v293 = vpack.c.b16 %v283, %v282
    %v294 = vpack.c.b16 %v285, %v284
    %v295 = vpack.c.b16 %v287, %v286
    %304 = vmatprep.subr.bf16.mxu0 0
    %305 = vmatpush1.bf16.msra.mxu0 %v241
    %306 = vmatprep.subr.bf16.mxu0 0
    %307 = vmatpush1.bf16.msra.mxu0 %v242
    %308 = vmatprep.subr.bf16.mxu0 0
    %309 = vmatpush1.bf16.msra.mxu0 %v243
    %310 = vmatprep.subr.bf16.mxu0 0
    %311 = vmatpush1.bf16.msra.mxu0 %v244
    %312 = vmatprep.subr.bf16.mxu0 0
    %313 = vmatpush1.bf16.msra.mxu0 %v245
    %314 = vmatprep.subr.bf16.mxu0 0
    %315 = vmatpush1.bf16.msra.mxu0 %v246
    %316 = vmatprep.subr.bf16.mxu0 0
    %317 = vmatpush1.bf16.msra.mxu0 %v247
    %318 = vmatprep.subr.bf16.mxu0 0
    %319 = vmatpush1.bf16.msra.mxu0 %v248
    %320 = vmatprep.subr.bf16.mxu0 0
    %321 = vmatpush1.bf16.msra.mxu0 0
    %322 = vmatprep.subr.bf16.mxu0 0
    %323 = vmatpush1.bf16.msra.mxu0 0
    %324 = vmatprep.subr.bf16.mxu0 0
    %325 = vmatpush1.bf16.msra.mxu0 0
    %326 = vmatprep.subr.bf16.mxu0 0
    %327 = vmatpush1.bf16.msra.mxu0 0
    %328 = vmatprep.subr.bf16.mxu0 0
    %329 = vmatpush1.bf16.msra.mxu0 0
    %330 = vmatprep.subr.bf16.mxu0 0
    %331 = vmatpush1.bf16.msra.mxu0 0
    %332 = vmatprep.subr.bf16.mxu0 0
    %333 = vmatpush1.bf16.msra.mxu0 0
    %334 = vmatprep.subr.bf16.mxu0 0
    %335 = vmatpush1.bf16.msra.mxu0 0
    %336 = vmatprep.mubr.bf16.mxu0 0
    %337 = vmatmul.mubr.bf16.gmra.mrb[0].mxu0 %v288
    %v338 = vpop.f32.mrb[0].mxu0
    %v339 = vadd.f32 %v254, %v338
    %v340 = vpop.f32.mrb[0].mxu0
    %v341 = vpop.f32.mrb[0].mxu0
    %v342 = vadd.f32 %v254, %v341
    %v343 = vpop.f32.mrb[0].mxu0
    %344 = vmatprep.mubr.bf16.mxu0 0
    %345 = vmatmul.mubr.bf16.gmra.mrb[0].mxu0 %v289
    %v346 = vpop.f32.mrb[0].mxu0
    %v347 = vadd.f32 %v254, %v346
    %v348 = vpop.f32.mrb[0].mxu0
    %v349 = vpop.f32.mrb[0].mxu0
    %v350 = vadd.f32 %v254, %v349
    %v351 = vpop.f32.mrb[0].mxu0
    %352 = vmatprep.mubr.bf16.mxu0 0
    %353 = vmatmul.mubr.bf16.gmra.mrb[0].mxu0 %v290
    %v354 = vpop.f32.mrb[0].mxu0
    %v355 = vadd.f32 %v254, %v354
    %v356 = vpop.f32.mrb[0].mxu0
    %v357 = vpop.f32.mrb[0].mxu0
    %v358 = vadd.f32 %v254, %v357
    %v359 = vpop.f32.mrb[0].mxu0
    %360 = vmatprep.mubr.bf16.mxu0 0
    %361 = vmatmul.mubr.bf16.gmra.mrb[0].mxu0 %v291
    %v362 = vpop.f32.mrb[0].mxu0
    %v363 = vadd.f32 %v254, %v362
    %v364 = vpop.f32.mrb[0].mxu0
    %v365 = vpop.f32.mrb[0].mxu0
    %v366 = vadd.f32 %v254, %v365
    %v367 = vpop.f32.mrb[0].mxu0
    %368 = vmatprep.mubr.bf16.mxu0 0
    %369 = vmatmul.mubr.bf16.gmra.mrb[0].mxu0 %v292
    %v370 = vpop.f32.mrb[0].mxu0
    %v371 = vadd.f32 %v254, %v370
    %v372 = vpop.f32.mrb[0].mxu0
    %v373 = vpop.f32.mrb[0].mxu0
    %v374 = vadd.f32 %v254, %v373
    %v375 = vpop.f32.mrb[0].mxu0
    %376 = vmatprep.mubr.bf16.mxu0 0
    %377 = vmatmul.mubr.bf16.gmra.mrb[0].mxu0 %v293
    %v378 = vpop.f32.mrb[0].mxu0
    %v379 = vadd.f32 %v254, %v378
    %v380 = vpop.f32.mrb[0].mxu0
    %v381 = vpop.f32.mrb[0].mxu0
    %v382 = vadd.f32 %v254, %v381
    %v383 = vpop.f32.mrb[0].mxu0
    %384 = vmatprep.mubr.bf16.mxu0 0
    %385 = vmatmul.mubr.bf16.gmra.mrb[0].mxu0 %v294
    %v386 = vpop.f32.mrb[0].mxu0
    %v387 = vadd.f32 %v254, %v386
    %v388 = vpop.f32.mrb[0].mxu0
    %v389 = vpop.f32.mrb[0].mxu0
    %v390 = vadd.f32 %v254, %v389
    %v391 = vpop.f32.mrb[0].mxu0
    %392 = vmatprep.mubr.bf16.mxu0 0
    %393 = vmatmul.mubr.bf16.gmra.mrb[0].mxu0 %v295
    %v394 = vpop.f32.mrb[0].mxu0
    %v395 = vadd.f32 %v254, %v394
    %v396 = vpop.f32.mrb[0].mxu0
    %v397 = vpop.f32.mrb[0].mxu0
    %v398 = vadd.f32 %v254, %v397
    %v399 = vpop.f32.mrb[0].mxu0
    %400 = vdwg.mxu0
    %v401 = vmax.f32 %v339, 0.0
    %v402 = vmax.f32 %v342, 0.0
    %v403 = vmax.f32 %v347, 0.0
    %v404 = vmax.f32 %v350, 0.0
    %v405 = vmax.f32 %v355, 0.0
    %v406 = vmax.f32 %v358, 0.0
    %v407 = vmax.f32 %v363, 0.0
    %v408 = vmax.f32 %v366, 0.0
    %v409 = vmax.f32 %v371, 0.0
    %v410 = vmax.f32 %v374, 0.0
    %v411 = vmax.f32 %v379, 0.0
    %v412 = vmax.f32 %v382, 0.0
    %v413 = vmax.f32 %v387, 0.0
    %v414 = vmax.f32 %v390, 0.0
    %v415 = vmax.f32 %v395, 0.0
    %v416 = vmax.f32 %v398, 0.0
    %vm417 = vcmask 261120
    %v418 = vsel %vm417, %v401, 0.0
    %v419 = vrot.slane %v418, 4
    %v420 = vadd.f32 %v418, %v419
    %v421 = vrot.slane %v420, 2
    %v422 = vadd.f32 %v420, %v421
    %v423 = vrot.slane %v422, 1
    %v424 = vadd.f32 %v422, %v423
    %v425 = vsel %vm417, %v402, 0.0
    %v426 = vrot.slane %v425, 4
    %v427 = vadd.f32 %v425, %v426
    %v428 = vrot.slane %v427, 2
    %v429 = vadd.f32 %v427, %v428
    %v430 = vrot.slane %v429, 1
    %v431 = vadd.f32 %v429, %v430
    %v432 = vsel %vm417, %v403, 0.0
    %v433 = vrot.slane %v432, 4
    %v434 = vadd.f32 %v432, %v433
    %v435 = vrot.slane %v434, 2
    %v436 = vadd.f32 %v434, %v435
    %v437 = vrot.slane %v436, 1
    %v438 = vadd.f32 %v436, %v437
    %v439 = vsel %vm417, %v404, 0.0
    %v440 = vrot.slane %v439, 4
    %v441 = vadd.f32 %v439, %v440
    %v442 = vrot.slane %v441, 2
    %v443 = vadd.f32 %v441, %v442
    %v444 = vrot.slane %v443, 1
    %v445 = vadd.f32 %v443, %v444
    %v446 = vsel %vm417, %v405, 0.0
    %v447 = vrot.slane %v446, 4
    %v448 = vadd.f32 %v446, %v447
    %v449 = vrot.slane %v448, 2
    %v450 = vadd.f32 %v448, %v449
    %v451 = vrot.slane %v450, 1
    %v452 = vadd.f32 %v450, %v451
    %v453 = vsel %vm417, %v406, 0.0
    %v454 = vrot.slane %v453, 4
    %v455 = vadd.f32 %v453, %v454
    %v456 = vrot.slane %v455, 2
    %v457 = vadd.f32 %v455, %v456
    %v458 = vrot.slane %v457, 1
    %v459 = vadd.f32 %v457, %v458
    %v460 = vsel %vm417, %v407, 0.0
    %v461 = vrot.slane %v460, 4
    %v462 = vadd.f32 %v460, %v461
    %v463 = vrot.slane %v462, 2
    %v464 = vadd.f32 %v462, %v463
    %v465 = vrot.slane %v464, 1
    %v466 = vadd.f32 %v464, %v465
    %v467 = vsel %vm417, %v408, 0.0
    %v468 = vrot.slane %v467, 4
    %v469 = vadd.f32 %v467, %v468
    %v470 = vrot.slane %v469, 2
    %v471 = vadd.f32 %v469, %v470
    %v472 = vrot.slane %v471, 1
    %v473 = vadd.f32 %v471, %v472
    %v474 = vsel %vm417, %v409, 0.0
    %v475 = vrot.slane %v474, 4
    %v476 = vadd.f32 %v474, %v475
    %v477 = vrot.slane %v476, 2
    %v478 = vadd.f32 %v476, %v477
    %v479 = vrot.slane %v478, 1
    %v480 = vadd.f32 %v478, %v479
    %v481 = vsel %vm417, %v410, 0.0
    %v482 = vrot.slane %v481, 4
    %v483 = vadd.f32 %v481, %v482
    %v484 = vrot.slane %v483, 2
    %v485 = vadd.f32 %v483, %v484
    %v486 = vrot.slane %v485, 1
    %v487 = vadd.f32 %v485, %v486
    %v488 = vsel %vm417, %v411, 0.0
    %v489 = vrot.slane %v488, 4
    %v490 = vadd.f32 %v488, %v489
    %v491 = vrot.slane %v490, 2
    %v492 = vadd.f32 %v490, %v491
    %v493 = vrot.slane %v492, 1
    %v494 = vadd.f32 %v492, %v493
    %v495 = vsel %vm417, %v412, 0.0
    %v496 = vrot.slane %v495, 4
    %v497 = vadd.f32 %v495, %v496
    %v498 = vrot.slane %v497, 2
    %v499 = vadd.f32 %v497, %v498
    %v500 = vrot.slane %v499, 1
    %v501 = vadd.f32 %v499, %v500
    %v502 = vsel %vm417, %v413, 0.0
    %v503 = vrot.slane %v502, 4
    %v504 = vadd.f32 %v502, %v503
    %v505 = vrot.slane %v504, 2
    %v506 = vadd.f32 %v504, %v505
    %v507 = vrot.slane %v506, 1
    %v508 = vadd.f32 %v506, %v507
    %v509 = vsel %vm417, %v414, 0.0
    %v510 = vrot.slane %v509, 4
    %v511 = vadd.f32 %v509, %v510
    %v512 = vrot.slane %v511, 2
    %v513 = vadd.f32 %v511, %v512
    %v514 = vrot.slane %v513, 1
    %v515 = vadd.f32 %v513, %v514
    %v516 = vsel %vm417, %v415, 0.0
    %v517 = vrot.slane %v516, 4
    %v518 = vadd.f32 %v516, %v517
    %v519 = vrot.slane %v518, 2
    %v520 = vadd.f32 %v518, %v519
    %v521 = vrot.slane %v520, 1
    %v522 = vadd.f32 %v520, %v521
    %v523 = vsel %vm417, %v416, 0.0
    %v524 = vrot.slane %v523, 4
    %v525 = vadd.f32 %v523, %v524
    %v526 = vrot.slane %v525, 2
    %v527 = vadd.f32 %v525, %v526
    %v528 = vrot.slane %v527, 1
    %v529 = vadd.f32 %v527, %v528
    %v530 = vpack.c.bf16 %v424, %v424
    %v531 = vpack.c.bf16 %v431, %v431
    %v532 = vpack.c.bf16 %v438, %v438
    %v533 = vpack.c.bf16 %v445, %v445
    %v534 = vpack.c.bf16 %v452, %v452
    %v535 = vpack.c.bf16 %v459, %v459
    %v536 = vpack.c.bf16 %v466, %v466
    %v537 = vpack.c.bf16 %v473, %v473
    %v538 = vpack.c.bf16 %v480, %v480
    %v539 = vpack.c.bf16 %v487, %v487
    %v540 = vpack.c.bf16 %v494, %v494
    %v541 = vpack.c.bf16 %v501, %v501
    %v542 = vpack.c.bf16 %v508, %v508
    %v543 = vpack.c.bf16 %v515, %v515
    %v544 = vpack.c.bf16 %v522, %v522
    %v545 = vpack.c.bf16 %v529, %v529
    %v546 = vld [vmem:[%s4] sm:$0xf]
    %v547 = vld [vmem:[%s4 + $0x4] sm:$0xf]
    %v548 = vld [vmem:[%s4 + $0x8] sm:$0xf]
    %v549 = vld [vmem:[%s4 + $0xc] sm:$0xf]
    %v550 = vld [vmem:[%s5] sm:$0x1]
    %v552 = vlaneseq
    %v553 = vshrl.u32 %v552, 7
    %v554 = vsub.s32 0, %v553
    %v555 = vrot.slane %v550, %v554
    %v573 = vunpack.c.l.b16 %v530
    %v574 = vunpack.c.l.b16 %v531
    %v575 = vunpack.c.l.b16 %v532
    %v576 = vunpack.c.l.b16 %v533
    %v577 = vunpack.c.l.b16 %v534
    %v578 = vunpack.c.l.b16 %v535
    %v579 = vunpack.c.l.b16 %v536
    %v580 = vunpack.c.l.b16 %v537
    %v581 = vunpack.c.l.b16 %v538
    %v582 = vunpack.c.l.b16 %v539
    %v583 = vunpack.c.l.b16 %v540
    %v584 = vunpack.c.l.b16 %v541
    %v585 = vunpack.c.l.b16 %v542
    %v586 = vunpack.c.l.b16 %v543
    %v587 = vunpack.c.l.b16 %v544
    %v588 = vunpack.c.l.b16 %v545
    %vm589 = vcmask 1041409
    %v590 = vsel %vm589, %v574, %v573
    %vm591 = vcmask 1042434
    %v592 = vsel %vm591, %v575, %v590
    %vm593 = vcmask 1043459
    %v594 = vsel %vm593, %v576, %v592
    %vm595 = vcmask 1044484
    %v596 = vsel %vm595, %v577, %v594
    %vm597 = vcmask 1045509
    %v598 = vsel %vm597, %v578, %v596
    %vm599 = vcmask 1046534
    %v600 = vsel %vm599, %v579, %v598
    %vm601 = vcmask 1047559
    %v602 = vsel %vm601, %v580, %v600
    %v603 = vsel %vm589, %v582, %v581
    %v604 = vsel %vm591, %v583, %v603
    %v605 = vsel %vm593, %v584, %v604
    %v606 = vsel %vm595, %v585, %v605
    %v607 = vsel %vm597, %v586, %v606
    %v608 = vsel %vm599, %v587, %v607
    %v609 = vsel %vm601, %v588, %v608
    %v610 = vpack.c.b16 %v609, %v602
    %v615 = vunpack.c.l.b16 %v546
    %v616 = vunpack.c.l.b16 %v547
    %v617 = vunpack.c.l.b16 %v548
    %v618 = vunpack.c.l.b16 %v549
    %v619 = vpack.c.b16 %v616, %v615
    %v620 = vpack.c.b16 %v618, %v617
    %v624 = vsel %vm417, %v610, 0
    %626 = vmatprep.subr.bf16.mxu0 0
    %627 = vmatpush1.bf16.msra.mxu0 %v619
    %628 = vmatprep.subr.bf16.mxu0 0
    %629 = vmatpush1.bf16.msra.mxu0 %v620
    %630 = vmatprep.subr.bf16.mxu0 0
    %631 = vmatpush1.bf16.msra.mxu0 0
    %632 = vmatprep.subr.bf16.mxu0 0
    %633 = vmatpush1.bf16.msra.mxu0 0
    %634 = vmatprep.subr.bf16.mxu0 0
    %635 = vmatpush1.bf16.msra.mxu0 0
    %636 = vmatprep.subr.bf16.mxu0 0
    %637 = vmatpush1.bf16.msra.mxu0 0
    %638 = vmatprep.subr.bf16.mxu0 0
    %639 = vmatpush1.bf16.msra.mxu0 0
    %640 = vmatprep.subr.bf16.mxu0 0
    %641 = vmatpush1.bf16.msra.mxu0 0
    %642 = vmatprep.subr.bf16.mxu0 0
    %643 = vmatpush1.bf16.msra.mxu0 0
    %644 = vmatprep.subr.bf16.mxu0 0
    %645 = vmatpush1.bf16.msra.mxu0 0
    %646 = vmatprep.subr.bf16.mxu0 0
    %647 = vmatpush1.bf16.msra.mxu0 0
    %648 = vmatprep.subr.bf16.mxu0 0
    %649 = vmatpush1.bf16.msra.mxu0 0
    %650 = vmatprep.subr.bf16.mxu0 0
    %651 = vmatpush1.bf16.msra.mxu0 0
    %652 = vmatprep.subr.bf16.mxu0 0
    %653 = vmatpush1.bf16.msra.mxu0 0
    %654 = vmatprep.subr.bf16.mxu0 0
    %655 = vmatpush1.bf16.msra.mxu0 0
    %656 = vmatprep.subr.bf16.mxu0 0
    %657 = vmatpush1.bf16.msra.mxu0 0
    %658 = vmatprep.mubr.bf16.mxu0 0
    %659 = vmatmul.mubr.bf16.gmra.mrb[0].mxu0 %v624
    %v660 = vpop.f32.mrb[0].mxu0
    %v661 = vadd.f32 %v555, %v660
    %v662 = vpop.f32.mrb[0].mxu0
    %v663 = vpop.f32.mrb[0].mxu0
    %v664 = vadd.f32 %v555, %v663
    %v665 = vpop.f32.mrb[0].mxu0
    %666 = vdwg.mxu0
    %667 = vst [vmem:[#allocation5] sm:$0xff] %v661
    %668 = vst [vmem:[#allocation5 + $0x8] sm:$0xff] %v664
    // Predicated region
    $region30: #{tpu_custom_call.1} parent=1 // pred_check
      _
    $region31: #{tpu_custom_call.1} parent=1 // pred_check_branch
      %670 = sbr.rel (0) target = $region33
    $region32: #{tpu_custom_call.1} parent=1 // pred_region
      %s672 = ssub.s32 256, 256
      %673 = vsyncadd [#allocation4], %s672
      %s674 = sshll.u32 [#allocation5], 4
      %s675 = int_to_ptr.vmem [resolvable:$true] %s674
      %680 = dma.vmem_to_hbm [thread:$0]  %s675, 256, %s6, [#allocation4], 128, 128, 8
    $region33: #{tpu_custom_call.1} parent=1 // pred_fallthru
      _
    // Predicated region
    $region34: #{tpu_custom_call.1} parent=1 // pred_check
      _
    $region35: #{tpu_custom_call.1} parent=1 // pred_check_branch
      %682 = sbr.rel (0) target = $region37
    $region36: #{tpu_custom_call.1} parent=1 // pred_region
      %683 = dma.done [#allocation4], 256
    $region37: #{tpu_custom_call.1} parent=1 // pred_fallthru
      _
    %684 = vsyncpa [#allocation3], 1
    %685 = vsyncpa [#allocation4], 1

</llo_original>
